<compile_context>
chip_gen: v5e
topology: v5e:2x2
jax: 0.10.0
libtpu: 0.0.40
codegen_flags: <defaults>
</compile_context>

<pallas_src>
import jax
import jax.numpy as jnp
from jax.experimental import pallas as pl
from jax.experimental.pallas import tpu as pltpu


# ---------------------------------------------------------------------------
# Op libraries (static `t`, pure jnp elementwise math -> VPU/EUP inside kernel)
# ---------------------------------------------------------------------------
def _unary(x, t):
    x = x.astype(jnp.float32)
    if t == 0:
        return x
    elif t == 1:
        return jnp.zeros_like(x)
    elif t == 2:
        return x * x
    elif t == 3:
        return x * x * x
    elif t == 4:
        return jnp.sign(x) * jnp.sqrt(jnp.abs(x) + 1e-08)
    elif t == 5:
        return jnp.log(jnp.abs(x) + 1e-08)
    elif t == 6:
        return jnp.sin(x)
    elif t == 7:
        return jnp.cos(x)
    elif t == 8:
        return 1.0 / (1.0 + jnp.exp(-x))
    elif t == 9:
        return jnp.tan(x)
    elif t == 10:
        return jnp.arctan(x)
    elif t == 11:
        return jax.lax.erf(x)
    elif t == 12:
        return 1.0 - jax.lax.erf(x)  # erfc
    elif t == 13:
        return jnp.exp(-jnp.abs(x) + 1e-08)
    elif t == 14:
        return jnp.exp(-x * x)
    elif t == 15:
        return jnp.maximum(x, jnp.zeros_like(x))
    elif t == 16:
        return jnp.minimum(x, jnp.zeros_like(x))
    elif t == 17:
        return jnp.abs(x)
    else:
        return -x


def _binary(x, y, t):
    if t == 0:
        return x + y
    elif t == 1:
        return x - y
    elif t == 2:
        return x * y
    elif t == 3:
        return x / (y + 1e-08)
    elif t == 4:
        return x / (x + y + 1e-08)
    elif t == 5:
        return jnp.maximum(x, y)
    elif t == 6:
        return jnp.minimum(x, y)
    elif t == 7:
        return x / (1.0 + jnp.exp(-y))
    elif t == 8:
        return jnp.exp(-jnp.square(x - y))
    else:
        return jnp.exp(-jnp.abs(x - y))


# ---------------------------------------------------------------------------
# Pallas kernel (built per static UB_ops configuration)
# ---------------------------------------------------------------------------
def _make_kernel(ub_ops, slot_map, has_params):
    t0, t1, t2 = ub_ops

    def kernel(*refs):
        if has_params:
            x_ref, p_ref, o_ref = refs
        else:
            x_ref, o_ref = refs
            p_ref = None

        x = x_ref[...].astype(jnp.float32)      # (R_blk, L_blk), lane-dense

        def scal(name):
            # per-row scalar column -> (R_blk, 1); broadcasts over lanes
            i = slot_map[name]
            return p_ref[:, i:i + 1].astype(jnp.float32)

        # branch 1
        if t0 == 19:
            x1 = scal("s_1") * x
        elif t0 == 20:
            x1 = x + scal("s_2")
        elif t0 == 21:
            x1 = jnp.broadcast_to(scal("s_1"), x.shape)
        else:
            x1 = _unary(x, t0)

        # branch 2
        if t1 == 19:
            x2 = scal("s_3") * x
        elif t1 == 20:
            x2 = x + scal("s_4")
        elif t1 == 21:
            x2 = jnp.broadcast_to(scal("s_3"), x.shape)
        else:
            x2 = _unary(x, t1)

        # combine
        if t2 == 10:
            sb = scal("sb")
            out = sb * x1 + (1.0 - sb) * x2
        else:
            out = _binary(x1, x2, t2)

        o_ref[...] = out.astype(o_ref.dtype)

    return kernel


def _pick_block(total, target, align):
    """Largest block <= target that satisfies the (8,128) layout constraint."""
    if total <= target:
        return total                    # full extent is always legal
    return max((target // align) * align, align)


def learnable_bias_forward(x, params, ub_ops,
                           *, row_block_target=256, lane_block_target=2048):
    """x: (N, C, H, W). params: dict of (1, C, 1, 1) arrays. ub_ops: 3 ints."""
    N, C, H, W = x.shape
    ub_ops = tuple(int(t) for t in ub_ops)
    t0, t1, t2 = ub_ops

    R, L = N * C, H * W
    x2d = x.reshape(R, L)               # free reshape, channel on sublane axis

    # Only the params actually used by the (static) selected branches.
    needed = []
    if t0 in (19, 21):
        needed.append("s_1")
    if t0 == 20:
        needed.append("s_2")
    if t1 in (19, 21):
        needed.append("s_3")
    if t1 == 20:
        needed.append("s_4")
    if t2 == 10:
        needed.append("sb")
    slot_map = {name: i for i, name in enumerate(needed)}
    has_params = bool(needed)

    R_blk = _pick_block(R, row_block_target, 8)
    L_blk = _pick_block(L, lane_block_target, 128)
    grid = (pl.cdiv(R, R_blk), pl.cdiv(L, L_blk))
    # ~2 MiB f32 tiles; double-buffered in+out stays well under the default
    # scoped-VMEM limit on v5e/v6e/v7x.

    x_spec = pl.BlockSpec((R_blk, L_blk), lambda i, j: (i, j))
    o_spec = pl.BlockSpec((R_blk, L_blk), lambda i, j: (i, j))
    in_specs = [x_spec]
    args = [x2d]

    if has_params:
        # Per-row scalar table: row r = n*C + c -> channel c = r % C.
        cols = [jnp.tile(params[name].reshape(C), N) for name in needed]
        ptab = jnp.stack(cols, axis=1).astype(jnp.float32)     # (R, P)
        P = len(needed)
        in_specs.append(pl.BlockSpec((R_blk, P), lambda i, j: (i, 0)))
        args.append(ptab)

    kernel = _make_kernel(ub_ops, slot_map, has_params)

    out2d = pl.pallas_call(
        kernel,
        out_shape=jax.ShapeDtypeStruct((R, L), jnp.float32),
        grid_spec=pltpu.PrefetchScalarGridSpec(
            num_scalar_prefetch=0,
            grid=grid,
            in_specs=in_specs,
            out_specs=o_spec,
        ),
        compiler_params=pltpu.CompilerParams(
            dimension_semantics=("parallel", "parallel")),
    )(*args)

    return out2d.reshape(N, C, H, W)


# ---------------------------------------------------------------------------
# Pure-JAX reference (mirrors the PyTorch forward exactly)
# ---------------------------------------------------------------------------
def learnable_bias_reference(x, params, ub_ops):
    t0, t1, t2 = (int(t) for t in ub_ops)
    xf = x.astype(jnp.float32)
    s1, s2 = params["s_1"], params["s_2"]
    s3, s4, sb = params["s_3"], params["s_4"], params["sb"]

    if t0 == 19:
        x1 = s1 * xf
    elif t0 == 20:
        x1 = xf + s2
    elif t0 == 21:
        x1 = jnp.broadcast_to(s1, xf.shape)
    else:
        x1 = _unary(xf, t0)

    if t1 == 19:
        x2 = s3 * xf
    elif t1 == 20:
        x2 = xf + s4
    elif t1 == 21:
        x2 = jnp.broadcast_to(s3, xf.shape)
    else:
        x2 = _unary(xf, t1)

    if t2 == 10:
        return sb * x1 + (1.0 - sb) * x2
    return _binary(x1, x2, t2)


if __name__ == "__main__":
    N, C, H, W = 2, 4, 16, 16
    key = jax.random.PRNGKey(0)
    kx, k1, k2, k3, k4, kb = jax.random.split(key, 6)

    x = jax.random.normal(kx, (N, C, H, W), dtype=jnp.float32)

    params = {
        "s_1": jnp.ones((1, C, 1, 1), jnp.float32)
               + 0.1 * jax.random.normal(k1, (1, C, 1, 1), jnp.float32),
        "s_2": jnp.zeros((1, C, 1, 1), jnp.float32)
               + 0.1 * jax.random.normal(k2, (1, C, 1, 1), jnp.float32),
        "s_3": jnp.ones((1, C, 1, 1), jnp.float32)
               + 0.1 * jax.random.normal(k3, (1, C, 1, 1), jnp.float32),
        "s_4": jnp.zeros((1, C, 1, 1), jnp.float32)
               + 0.1 * jax.random.normal(k4, (1, C, 1, 1), jnp.float32),
        "sb":  jnp.ones((1, C, 1, 1), jnp.float32)
               + 0.1 * jax.random.normal(kb, (1, C, 1, 1), jnp.float32),
    }

    # cfg1: learnable branches + learnable mix: x1=s_1*x, x2=sigmoid(x),
    #       out = sb*x1 + (1-sb)*x2
    UB_ops = (19, 8, 10)
    out = jax.block_until_ready(learnable_bias_forward(x, params, UB_ops))
    ref = learnable_bias_reference(x, params, UB_ops)
    assert out.shape == (N, C, H, W) and out.dtype == jnp.float32
    assert jnp.allclose(out, ref, atol=1e-5, rtol=1e-5), "mismatch (cfg1)"

    # cfg2: pure Unary/Binary configuration (no learnable params at all ->
    #       param table is not even passed to the kernel).
    UB_ops2 = (4, 14, 9)
    out2 = jax.block_until_ready(learnable_bias_forward(x, params, UB_ops2))
    ref2 = learnable_bias_reference(x, params, UB_ops2)
    assert jnp.allclose(out2, ref2, atol=1e-5, rtol=1e-5), "mismatch (cfg2)"

    # cfg3: bias branch + constant branch + multiply combine
    #       (exercises s_2 and s_3 columns of the param table).
    UB_ops3 = (20, 21, 2)
    out3 = jax.block_until_ready(learnable_bias_forward(x, params, UB_ops3))
    ref3 = learnable_bias_reference(x, params, UB_ops3)
    assert jnp.allclose(out3, ref3, atol=1e-5, rtol=1e-5), "mismatch (cfg3)"

    print("KERNEL_OK")
</pallas_src>

<mosaic_0001>
module attributes {stable_mosaic.version = 11 : i64} {
  func.func @kernel(%arg0: i32, %arg1: i32, %arg2: memref<8x256xf32, #tpu.memory_space<vmem>>, %arg3: memref<8x2xf32, #tpu.memory_space<vmem>>, %arg4: memref<8x256xf32, #tpu.memory_space<vmem>>) attributes {dimension_semantics = [#tpu.dimension_semantics<parallel>, #tpu.dimension_semantics<parallel>], iteration_bounds = array<i64: 1, 1>, scalar_prefetch = 0 : i64, scratch_operands = 0 : i64, tpu.core_type = #tpu.core_type<tc>, window_params = [{transform_indices = @transform_0, window_bounds = array<i64: 8, 256>}, {transform_indices = @transform_1, window_bounds = array<i64: 8, 2>}, {transform_indices = @transform_2, window_bounds = array<i64: 8, 256>}]} {
    %c0 = arith.constant 0 : index
    %c0_0 = arith.constant 0 : index
    %0 = vector.load %arg2[%c0, %c0_0] : memref<8x256xf32, #tpu.memory_space<vmem>>, vector<8x256xf32>
    %c0_1 = arith.constant 0 : index
    %c0_2 = arith.constant 0 : index
    %1 = vector.load %arg3[%c0_1, %c0_2] : memref<8x2xf32, #tpu.memory_space<vmem>>, vector<8x1xf32>
    %2 = vector.broadcast %1 : vector<8x1xf32> to vector<8x256xf32>
    %3 = arith.mulf %2, %0 : vector<8x256xf32>
    %cst = arith.constant 0.000000e+00 : f32
    %4 = vector.broadcast %cst : f32 to vector<8x256xf32>
    %5 = arith.subf %4, %0 : vector<8x256xf32>
    %6 = math.exp %5 : vector<8x256xf32>
    %cst_3 = arith.constant 1.000000e+00 : f32
    %7 = vector.broadcast %cst_3 : f32 to vector<8x256xf32>
    %8 = arith.addf %7, %6 : vector<8x256xf32>
    %cst_4 = arith.constant 1.000000e+00 : f32
    %9 = vector.broadcast %cst_4 : f32 to vector<8x256xf32>
    %10 = arith.divf %9, %8 : vector<8x256xf32>
    %c0_5 = arith.constant 0 : index
    %c1 = arith.constant 1 : index
    %11 = vector.load %arg3[%c0_5, %c1] : memref<8x2xf32, #tpu.memory_space<vmem>>, vector<8x1xf32>
    %12 = vector.broadcast %11 : vector<8x1xf32> to vector<8x256xf32>
    %13 = arith.mulf %12, %3 : vector<8x256xf32>
    %cst_6 = arith.constant 1.000000e+00 : f32
    %14 = vector.broadcast %cst_6 : f32 to vector<8x1xf32>
    %15 = arith.subf %14, %11 : vector<8x1xf32>
    %16 = vector.broadcast %15 : vector<8x1xf32> to vector<8x256xf32>
    %17 = arith.mulf %16, %10 : vector<8x256xf32>
    %18 = arith.addf %13, %17 : vector<8x256xf32>
    %c0_7 = arith.constant 0 : index
    %c0_8 = arith.constant 0 : index
    %19 = vector.load %arg4[%c0_7, %c0_8] : memref<8x256xf32, #tpu.memory_space<vmem>>, vector<8x256xf32>
    tpu.vector_store %arg4[%c0_7, %c0_8], %18 {strides = array<i32>} : memref<8x256xf32, #tpu.memory_space<vmem>>, vector<8x256xf32>,
    return
  }
  func.func @transform_0(%arg0: i32, %arg1: i32) -> (i32, i32) {
    %c0_i32 = arith.constant 0 : i32
    return %arg0, %arg1 : i32, i32
  }
  func.func @transform_1(%arg0: i32, %arg1: i32) -> (i32, i32) {
    %c0_i32 = arith.constant 0 : i32
    %c0_i32_0 = arith.constant 0 : i32
    return %arg0, %c0_i32 : i32, i32
  }
  func.func @transform_2(%arg0: i32, %arg1: i32) -> (i32, i32) {
    %c0_i32 = arith.constant 0 : i32
    return %arg0, %arg1 : i32, i32
  }
}

</mosaic_0001>

<llo_original>
// kernel: tpu_custom_call.1
$region0: #{tpu_custom_call.1}
  #allocation0 [shape = 'u32[]', space=smem, size = 0x4, offset = 0x4, fixed_abs, tag = 'smem constant byte address 0x4 - core index']
  #allocation1 [shape = 'u32[72,128]{1,0:T(1,128)}', space=vmem, size = 0x9000, scoped, tag = 'internal scratch']
  %s0 = inlined_call_operand.hbm [shape: f32[8,256], index: 0, kind: input, shape index: {}]
  %s1 = inlined_call_operand.vmem [shape: f32[8,2], index: 1, kind: input, shape index: {}]
  %s2 = inlined_call_operand.hbm [shape: f32[8,256], index: 2, kind: output, shape index: {}]
  %s3 = sld [smem:[#allocation0]]
  $region22: #{tpu_custom_call.1} parent=0
    _
  %s5 = ssub.s32 1, %s3
  %s6 = scalar_select 0, %s5, %s3
  $region1: #{tpu_custom_call.1} parent=0
    #allocation2 [shape = 'u8[8192]{0}', space=vmem, size = 0x2000, scoped, tag = 'input window, operand 0, single buffered']
    #allocation3 [shape = 's32[1]{0}', space=sflag, size = 0x4, scoped, tag = 'scoped memory for tpu_custom_call.1']
    #allocation4 [shape = 's32[1]{0}', space=sflag, size = 0x4, scoped, tag = 'scoped memory for tpu_custom_call.1']
    #allocation5 [shape = 'u8[8192]{0}', space=vmem, size = 0x2000, scoped, tag = 'output window, operand 0, single buffered']
    %7 = vsyncpa [#allocation3], 0
    %8 = vsyncpa [#allocation4], 0
    // Predicated region
    $region2: #{tpu_custom_call.1} parent=1 // pred_check
      _
    $region3: #{tpu_custom_call.1} parent=1 // pred_check_branch
      %10 = sbr.rel (0) target = $region5
    $region4: #{tpu_custom_call.1} parent=1 // pred_region
      %12 = vsyncadd [#allocation3], 0
      %s14 = sshll.u32 %s0, 4
      %s15 = int_to_ptr.hbm [resolvable:$true] %s14
      %s16 = sshll.u32 [#allocation2], 4
      %s17 = int_to_ptr.vmem [resolvable:$true] %s16
      %19 = dma.hbm_to_vmem [thread:$0]  %s15, 256, %s17, [#allocation3]
    $region5: #{tpu_custom_call.1} parent=1 // pred_fallthru
      _
    // Predicated region
    $region6: #{tpu_custom_call.1} parent=1 // pred_check
      _
    $region7: #{tpu_custom_call.1} parent=1 // pred_check_branch
      %21 = sbr.rel (0) target = $region9
    $region8: #{tpu_custom_call.1} parent=1 // pred_region
      _
    $region9: #{tpu_custom_call.1} parent=1 // pred_fallthru
      _
    // Predicated region
    $region10: #{tpu_custom_call.1} parent=1 // pred_check
      _
    $region11: #{tpu_custom_call.1} parent=1 // pred_check_branch
      %23 = sbr.rel (0) target = $region13
    $region12: #{tpu_custom_call.1} parent=1 // pred_region
      %25 = dma.done [#allocation3], 256
    $region13: #{tpu_custom_call.1} parent=1 // pred_fallthru
      _
    %v26 = vld [vmem:[#allocation2] sm:$0xff]
    %v27 = vld [vmem:[#allocation2 + $0x8] sm:$0xff]
    %v28 = vld [vmem:[%s1] sm:$0xff]
    %30 = vset.pattern.permute.xlu0 0
    %31 = vperm.xlu0 %30, %v28
    %v32 = vpop.permute.xlu0 %31
    %v34 = vmul.f32 %v32, %v26
    %v35 = vmul.f32 %v32, %v27
    %v36 = vsub.f32 0.0, %v26
    %v37 = vsub.f32 0.0, %v27
    %v38 = vmul.f32 %v36, 1.442695
    %v39 = vpow.pop %v38
    %v40 = vmul.f32 %v37, 1.442695
    %v41 = vpow.pop %v40
    %v42 = vadd.f32 %v39, 1.0
    %v43 = vadd.f32 %v41, 1.0
    %v44 = vrcp.pop %v42
    %v45 = vmul.f32 %v42, %v44
    %v46 = vsub.f32 1.0, %v45
    %v47 = vmul.f32 %v44, %v46
    %v48 = vadd.f32 %v44, %v47
    %vm49 = vweird.f32 %v42
    %vm50 = vweird.f32 %v44
    %vm51 = vmor %vm49, %vm50
    %v52 = vsel %vm51, %v44, %v48
    %v53 = vand.u32 2147483647, %v42
    %vm54 = vcmp.eq.f32.partialorder %v53, 8.507059e+37
    %v55 = vand.u32 %v42, 2147483648
    %v56 = vor.u32 1.1754944e-38, %v55
    %v57 = vsel %vm54, %v56, %v52
    %v58 = vmul.f32 1.0, %v57
    %v59 = vrcp.pop %v43
    %v60 = vmul.f32 %v43, %v59
    %v61 = vsub.f32 1.0, %v60
    %v62 = vmul.f32 %v59, %v61
    %v63 = vadd.f32 %v59, %v62
    %vm64 = vweird.f32 %v43
    %vm65 = vweird.f32 %v59
    %vm66 = vmor %vm64, %vm65
    %v67 = vsel %vm66, %v59, %v63
    %v68 = vand.u32 2147483647, %v43
    %vm69 = vcmp.eq.f32.partialorder %v68, 8.507059e+37
    %v70 = vand.u32 %v43, 2147483648
    %v71 = vor.u32 1.1754944e-38, %v70
    %v72 = vsel %vm69, %v71, %v67
    %v73 = vmul.f32 1.0, %v72
    %74 = vset.pattern.permute.xlu0 1
    %75 = vperm.xlu0 %74, %v28
    %v76 = vpop.permute.xlu0 %75
    %v78 = vmul.f32 %v76, %v34
    %v79 = vmul.f32 %v76, %v35
    %v80 = vsub.f32 1.0, %v28
    %82 = vset.pattern.permute.xlu0 1
    %83 = vperm.xlu0 %82, %v80
    %v84 = vpop.permute.xlu0 %83
    %v86 = vmul.f32 %v84, %v58
    %v87 = vmul.f32 %v84, %v73
    %v88 = vadd.f32 %v78, %v86
    %v89 = vadd.f32 %v79, %v87
    %90 = vst [vmem:[#allocation5] sm:$0xff] %v88
    %91 = vst [vmem:[#allocation5 + $0x8] sm:$0xff] %v89
    // Predicated region
    $region14: #{tpu_custom_call.1} parent=1 // pred_check
      _
    $region15: #{tpu_custom_call.1} parent=1 // pred_check_branch
      %93 = sbr.rel (0) target = $region17
    $region16: #{tpu_custom_call.1} parent=1 // pred_region
      %95 = vsyncadd [#allocation4], 0
      %s97 = sshll.u32 [#allocation5], 4
      %s98 = int_to_ptr.vmem [resolvable:$true] %s97
      %s99 = sshll.u32 %s2, 4
      %s100 = int_to_ptr.hbm [resolvable:$true] %s99
      %102 = dma.vmem_to_hbm [thread:$0]  %s98, 256, %s100, [#allocation4]
    $region17: #{tpu_custom_call.1} parent=1 // pred_fallthru
      _
    // Predicated region
    $region18: #{tpu_custom_call.1} parent=1 // pred_check
      _
    $region19: #{tpu_custom_call.1} parent=1 // pred_check_branch
      %104 = sbr.rel (0) target = $region21
    $region20: #{tpu_custom_call.1} parent=1 // pred_region
      %106 = dma.done [#allocation4], 256
    $region21: #{tpu_custom_call.1} parent=1 // pred_fallthru
      _
    %107 = vsyncpa [#allocation3], 1
    %108 = vsyncpa [#allocation4], 1

</llo_original>
